<compile_context>
chip_gen: v7x
topology: tpu7x:2x2x1
jax: 0.10.0
libtpu: 0.0.40
codegen_flags: <defaults>
</compile_context>

<pallas_src>
import functools

import numpy as np
import jax
import jax.numpy as jnp
from jax import lax
from jax.experimental import pallas as pl
from jax.experimental.pallas import tpu as pltpu

_OUT_LANES = 128        # lane-dense output row per sample: [ce, temporal, total, 0, ...]


def _round_up(v, m):
    return ((v + m - 1) // m) * m


def _taa_temporal_kernel(len_ref, tgt_ref, x_ref, out_ref, *,
                         num_classes, lambda_temporal, fps, toa):
    # len_ref / tgt_ref: (BB, 1) int32 in VMEM (per-sample length / target class)
    # x_ref:             (C, BB, T_pad) f32   (classes leading, samples on sublanes,
    #                                          time on 128-aligned lanes, zero padded)
    # out_ref:           (BB, 128) f32        (lanes 0..2 = ce, temporal, total)
    T_i = len_ref[...]                               # (BB, 1) int32
    tgt = tgt_ref[...]                               # (BB, 1) int32
    Tf = T_i.astype(jnp.float32)

    rows = [x_ref[c] for c in range(num_classes)]    # each (BB, T_pad) f32
    bb, t_pad = rows[0].shape

    lane_t = lax.broadcasted_iota(jnp.int32, (1, t_pad), 1)      # time index per lane
    tmask = lane_t < T_i                                          # (BB, T_pad) valid-time

    # ---- per-step cross entropy: lse(x[:, t]) - x[target, t] (elementwise, classes
    #      statically unrolled -> no cross-sublane reductions) ----------------------
    m = rows[0]
    for r in rows[1:]:
        m = jnp.maximum(m, r)
    s = jnp.exp(rows[0] - m)
    for r in rows[1:]:
        s = s + jnp.exp(r - m)
    lse = jnp.log(s) + m

    x_tgt = jnp.where(tgt == 0, rows[0], 0.0)
    for c in range(1, num_classes):
        x_tgt = jnp.where(tgt == c, rows[c], x_tgt)
    ce = jnp.where(tmask, lse - x_tgt, 0.0)                       # (BB, T_pad)

    # ---- positive-branch penalty weights --------------------------------------
    ts = lane_t.astype(jnp.float32)
    pen = jnp.exp(-jnp.maximum((toa - ts - 1.0) * (1.0 / fps), 0.0))
    pen = jnp.where(tmask, pen, 0.0)                              # (BB, T_pad)

    pen_sum = jnp.sum(pen, axis=1, keepdims=True)                 # (BB, 1)
    ce_sum = jnp.sum(ce, axis=1, keepdims=True)
    pence_sum = jnp.sum(pen * ce, axis=1, keepdims=True)

    # exact divisions (no chained approx reciprocals); guarded against T == 0
    ce_pos = pence_sum / jnp.maximum(pen_sum, 1e-30)              # == ratio * mean(pen*ce)
    ce_neg = ce_sum / jnp.maximum(Tf, 1.0)                        # == mean(ce)

    # ---- temporal terms from the accident logit (class-1 row); lane rolls on XLU.
    #      roll wrap-around only pollutes lanes >= T-1 / T-2 which the masks drop. --
    p = rows[1]                                                   # (BB, T_pad)
    d1 = pltpu.roll(p, shift=t_pad - 1, axis=1) - p               # d1[t] = p[t+1]-p[t]
    relu_nd1 = jnp.where(lane_t < T_i - 1, jnp.maximum(-d1, 0.0), 0.0)
    tl_pos = jnp.sum(relu_nd1, axis=1, keepdims=True) / jnp.maximum(Tf - 1.0, 1.0)

    d2 = pltpu.roll(d1, shift=t_pad - 1, axis=1) - d1             # d2[t] = d1[t+1]-d1[t]
    abs_d2 = jnp.where(lane_t < T_i - 2, jnp.abs(d2), 0.0)
    tl_neg = jnp.sum(abs_d2, axis=1, keepdims=True) / jnp.maximum(Tf - 2.0, 1.0)

    # ---- vectorized branch selection + lane-dense write ------------------------
    is_pos = tgt == 1
    ce_v = jnp.where(is_pos, ce_pos, ce_neg)                      # (BB, 1)
    tl_v = jnp.where(is_pos, tl_pos, tl_neg)
    tot_v = ce_v + lambda_temporal * tl_v

    lane = lax.broadcasted_iota(jnp.int32, (bb, _OUT_LANES), 1)
    out_ref[...] = jnp.where(lane == 0, ce_v,
                   jnp.where(lane == 1, tl_v,
                   jnp.where(lane == 2, tot_v, 0.0)))


def _taa_temporal_batched_impl(pred, lengths, targets, *,
                               lambda_temporal=0.01, fps=10.0, toa=90):
    """pred: (B, T_max, C) logits; lengths: (B,) int32; targets: (B,) int32."""
    pred = jnp.asarray(pred, jnp.float32)
    B, T_max, C = pred.shape
    if C < 2:
        raise ValueError("need at least 2 classes (accident logit is column 1)")

    T_pad = _round_up(max(T_max, 1), 128)
    BB = min(32, _round_up(B, 8))          # samples per grid step (multiple of 8)
    B_pad = _round_up(B, BB)

    # Host prep: one transpose + zero pad into the (C, B_pad, T_pad) kernel layout.
    # No class-dim padding; time kept 128-aligned so the in-kernel lane rolls are
    # on an aligned axis (<= 512 B of pad per class per sample).
    x = jnp.transpose(pred, (2, 0, 1))                            # (C, B, T_max)
    x = jnp.pad(x, ((0, 0), (0, B_pad - B), (0, T_pad - T_max)))
    lens = jnp.pad(jnp.asarray(lengths, jnp.int32).reshape(-1),
                   (0, B_pad - B), constant_values=1).reshape(B_pad, 1)
    tgts = jnp.pad(jnp.asarray(targets, jnp.int32).reshape(-1),
                   (0, B_pad - B), constant_values=0).reshape(B_pad, 1)

    kernel = functools.partial(
        _taa_temporal_kernel, num_classes=C,
        lambda_temporal=float(lambda_temporal), fps=float(fps), toa=float(toa))

    out = pl.pallas_call(
        kernel,
        out_shape=jax.ShapeDtypeStruct((B_pad, _OUT_LANES), jnp.float32),
        grid=(B_pad // BB,),
        in_specs=[
            pl.BlockSpec((BB, 1), lambda i: (i, 0)),              # lengths (VMEM)
            pl.BlockSpec((BB, 1), lambda i: (i, 0)),              # targets (VMEM)
            pl.BlockSpec((C, BB, T_pad), lambda i: (0, i, 0)),    # logits  (VMEM)
        ],
        out_specs=pl.BlockSpec((BB, _OUT_LANES), lambda i: (i, 0)),
        compiler_params=pltpu.CompilerParams(dimension_semantics=("parallel",)),
    )(lens, tgts, x)

    return {'ce_loss': out[:B, 0],
            'temporal_loss': out[:B, 1],
            'total_loss': out[:B, 2]}


taa_temporal_loss_batched = jax.jit(
    _taa_temporal_batched_impl, static_argnames=("lambda_temporal", "fps", "toa"))


def taa_temporal_loss(pred, target, *, lambda_temporal=0.01, fps=10.0, toa=90):
    """Single sample. pred: list of T (1, C) logit arrays (or one (T, C) array)."""
    if isinstance(pred, (list, tuple)):
        pred = jnp.stack([jnp.asarray(p, jnp.float32) for p in pred], axis=0)
        pred = pred.reshape(pred.shape[0], -1)
    pred = jnp.asarray(pred, jnp.float32)
    T = pred.shape[0]
    out = taa_temporal_loss_batched(
        pred[None],
        jnp.full((1,), T, jnp.int32),
        jnp.reshape(jnp.asarray(target, jnp.int32), (1,)),
        lambda_temporal=lambda_temporal, fps=fps, toa=toa)
    return {k: v[0] for k, v in out.items()}


def _reference(pred, target, lambda_temporal=0.01, fps=10.0, toa=90):
    """NumPy reference mirroring the PyTorch forward."""
    pred = np.asarray(pred, np.float32)
    T, _ = pred.shape
    m = pred.max(axis=1, keepdims=True)
    lse = np.log(np.exp(pred - m).sum(axis=1, keepdims=True)) + m
    ce = lse[:, 0] - pred[np.arange(T), target]
    p = pred[:, 1]
    if target == 1:
        t = np.arange(T, dtype=np.float32)
        pen = np.exp(-np.maximum((toa - t - 1.0) / fps, 0.0))
        ratio = T / pen.sum()
        ce_loss = float(np.mean(ratio * pen * ce))
        tl = float(np.mean(np.maximum(-(p[1:] - p[:-1]), 0.0))) if T > 1 else 0.0
    else:
        ce_loss = float(np.mean(ce))
        if T > 2:
            d = p[1:] - p[:-1]
            tl = float(np.mean(np.abs(d[1:] - d[:-1])))
        else:
            tl = 0.0
    return ce_loss, tl, ce_loss + lambda_temporal * tl


if __name__ == "__main__":
    key = jax.random.PRNGKey(0)
    k1, k2, k3 = jax.random.split(key, 3)
    ok = True
    RTOL, ATOL = 1e-4, 1e-5   # exact divisions now -> tight tolerance

    # --- single sample, binary classes (module's normal use), both branches ---
    T, C = 8, 2
    logits = jax.random.normal(k1, (T, C), dtype=jnp.float32)
    pred_list = [logits[i:i + 1] for i in range(T)]            # mimics list-of-(1,C) input
    for tgt in (1, 0):
        out = taa_temporal_loss(pred_list, tgt)
        jax.block_until_ready(out['total_loss'])
        got = (float(out['ce_loss']), float(out['temporal_loss']), float(out['total_loss']))
        ok &= np.allclose(got, _reference(np.asarray(logits), tgt), rtol=RTOL, atol=ATOL)

    # --- batched path (BB samples per grid step, vectorized branches), mixed targets ---
    B, T2 = 3, 6
    logits_b = jax.random.normal(k2, (B, T2, C), dtype=jnp.float32)
    tgts = np.array([1, 0, 1], np.int32)
    outb = taa_temporal_loss_batched(
        logits_b, jnp.full((B,), T2, jnp.int32), jnp.asarray(tgts))
    jax.block_until_ready(outb['total_loss'])
    for i in range(B):
        got = (float(outb['ce_loss'][i]), float(outb['temporal_loss'][i]),
               float(outb['total_loss'][i]))
        ok &= np.allclose(got, _reference(np.asarray(logits_b[i]), int(tgts[i])),
                          rtol=RTOL, atol=ATOL)

    # --- generic multi-class path (C > 2) ---
    T3, C3 = 7, 4
    logits3 = jax.random.normal(k3, (T3, C3), dtype=jnp.float32)
    for tgt in (1, 0):
        out3 = taa_temporal_loss(logits3, tgt)
        jax.block_until_ready(out3['total_loss'])
        got = (float(out3['ce_loss']), float(out3['temporal_loss']), float(out3['total_loss']))
        ok &= np.allclose(got, _reference(np.asarray(logits3), tgt), rtol=RTOL, atol=ATOL)

    if ok:
        print("KERNEL_OK")
    else:
        raise SystemExit("mismatch vs reference")
</pallas_src>

<mosaic_0001>
module attributes {stable_mosaic.version = 11 : i64} {
  func.func @_taa_temporal_kernel(%arg0: i32, %arg1: memref<8x1xi32, #tpu.memory_space<vmem>>, %arg2: memref<8x1xi32, #tpu.memory_space<vmem>>, %arg3: memref<2x8x128xf32, #tpu.memory_space<vmem>>, %arg4: memref<8x128xf32, #tpu.memory_space<vmem>>) attributes {dimension_semantics = [#tpu.dimension_semantics<parallel>], iteration_bounds = array<i64: 1>, scalar_prefetch = 0 : i64, scratch_operands = 0 : i64, tpu.core_type = #tpu.core_type<tc>, window_params = [{transform_indices = @transform_0, window_bounds = array<i64: 8, 1>}, {transform_indices = @transform_1, window_bounds = array<i64: 8, 1>}, {transform_indices = @transform_2, window_bounds = array<i64: 2, 8, 128>}, {transform_indices = @transform_3, window_bounds = array<i64: 8, 128>}]} {
    %c0 = arith.constant 0 : index
    %c0_0 = arith.constant 0 : index
    %0 = vector.load %arg1[%c0, %c0_0] : memref<8x1xi32, #tpu.memory_space<vmem>>, vector<8x1xi32>
    %c0_1 = arith.constant 0 : index
    %c0_2 = arith.constant 0 : index
    %1 = vector.load %arg2[%c0_1, %c0_2] : memref<8x1xi32, #tpu.memory_space<vmem>>, vector<8x1xi32>
    %2 = arith.sitofp %0 : vector<8x1xi32> to vector<8x1xf32>
    %c0_3 = arith.constant 0 : index
    %c0_4 = arith.constant 0 : index
    %c0_5 = arith.constant 0 : index
    %3 = vector.load %arg3[%c0_3, %c0_4, %c0_5] : memref<2x8x128xf32, #tpu.memory_space<vmem>>, vector<1x8x128xf32>
    %4 = vector.shape_cast %3 : vector<1x8x128xf32> to vector<8x128xf32>
    %c1 = arith.constant 1 : index
    %c0_6 = arith.constant 0 : index
    %c0_7 = arith.constant 0 : index
    %5 = vector.load %arg3[%c1, %c0_6, %c0_7] : memref<2x8x128xf32, #tpu.memory_space<vmem>>, vector<1x8x128xf32>
    %6 = vector.shape_cast %5 : vector<1x8x128xf32> to vector<8x128xf32>
    %7 = tpu.iota {dimensions = array<i32: 1>} : vector<1x128xi32>
    %8 = vector.broadcast %7 : vector<1x128xi32> to vector<8x128xi32>
    %9 = vector.broadcast %0 : vector<8x1xi32> to vector<8x128xi32>
    %10 = arith.cmpi slt, %8, %9 : vector<8x128xi32>
    %11 = arith.maximumf %4, %6 : vector<8x128xf32>
    %12 = arith.subf %4, %11 : vector<8x128xf32>
    %13 = math.exp %12 : vector<8x128xf32>
    %14 = arith.subf %6, %11 : vector<8x128xf32>
    %15 = math.exp %14 : vector<8x128xf32>
    %16 = arith.addf %13, %15 : vector<8x128xf32>
    %17 = math.log %16 : vector<8x128xf32>
    %18 = arith.addf %17, %11 : vector<8x128xf32>
    %c0_i32 = arith.constant 0 : i32
    %19 = vector.broadcast %c0_i32 : i32 to vector<8x1xi32>
    %20 = arith.cmpi eq, %1, %19 : vector<8x1xi32>
    %cst = arith.constant 0.000000e+00 : f32
    %21 = vector.shape_cast %20 : vector<8x1xi1> to vector<8x1xi1>
    %22 = vector.broadcast %21 : vector<8x1xi1> to vector<8x128xi1>
    %23 = vector.broadcast %cst : f32 to vector<8x128xf32>
    %24 = arith.select %22, %4, %23 : vector<8x128xi1>, vector<8x128xf32>
    %c1_i32 = arith.constant 1 : i32
    %25 = vector.broadcast %c1_i32 : i32 to vector<8x1xi32>
    %26 = arith.cmpi eq, %1, %25 : vector<8x1xi32>
    %27 = vector.shape_cast %26 : vector<8x1xi1> to vector<8x1xi1>
    %28 = vector.broadcast %27 : vector<8x1xi1> to vector<8x128xi1>
    %29 = arith.select %28, %6, %24 : vector<8x128xi1>, vector<8x128xf32>
    %30 = arith.subf %18, %29 : vector<8x128xf32>
    %cst_8 = arith.constant 0.000000e+00 : f32
    %31 = vector.broadcast %cst_8 : f32 to vector<8x128xf32>
    %32 = arith.select %10, %30, %31 : vector<8x128xi1>, vector<8x128xf32>
    %33 = arith.sitofp %7 : vector<1x128xi32> to vector<1x128xf32>
    %cst_9 = arith.constant 9.000000e+01 : f32
    %34 = vector.broadcast %cst_9 : f32 to vector<1x128xf32>
    %35 = arith.subf %34, %33 : vector<1x128xf32>
    %cst_10 = arith.constant 1.000000e+00 : f32
    %36 = vector.broadcast %cst_10 : f32 to vector<1x128xf32>
    %37 = arith.subf %35, %36 : vector<1x128xf32>
    %cst_11 = arith.constant 1.000000e-01 : f32
    %38 = vector.broadcast %cst_11 : f32 to vector<1x128xf32>
    %39 = arith.mulf %37, %38 : vector<1x128xf32>
    %cst_12 = arith.constant 0.000000e+00 : f32
    %40 = vector.broadcast %cst_12 : f32 to vector<1x128xf32>
    %41 = arith.maximumf %39, %40 : vector<1x128xf32>
    %cst_13 = arith.constant 0.000000e+00 : f32
    %42 = vector.broadcast %cst_13 : f32 to vector<1x128xf32>
    %43 = arith.subf %42, %41 : vector<1x128xf32>
    %44 = math.exp %43 : vector<1x128xf32>
    %cst_14 = arith.constant 0.000000e+00 : f32
    %45 = vector.shape_cast %44 : vector<1x128xf32> to vector<1x128xf32>
    %46 = vector.broadcast %45 : vector<1x128xf32> to vector<8x128xf32>
    %47 = vector.broadcast %cst_14 : f32 to vector<8x128xf32>
    %48 = arith.select %10, %46, %47 : vector<8x128xi1>, vector<8x128xf32>
    %cst_15 = arith.constant dense<0.000000e+00> : vector<8xf32>
    %49 = vector.multi_reduction <add>, %48, %cst_15 [1] : vector<8x128xf32> to vector<8xf32>
    %50 = vector.shape_cast %49 : vector<8xf32> to vector<8x1xf32>
    %cst_16 = arith.constant dense<0.000000e+00> : vector<8xf32>
    %51 = vector.multi_reduction <add>, %32, %cst_16 [1] : vector<8x128xf32> to vector<8xf32>
    %52 = vector.shape_cast %51 : vector<8xf32> to vector<8x1xf32>
    %53 = arith.mulf %48, %32 : vector<8x128xf32>
    %cst_17 = arith.constant dense<0.000000e+00> : vector<8xf32>
    %54 = vector.multi_reduction <add>, %53, %cst_17 [1] : vector<8x128xf32> to vector<8xf32>
    %55 = vector.shape_cast %54 : vector<8xf32> to vector<8x1xf32>
    %cst_18 = arith.constant 1.000000e-30 : f32
    %56 = vector.broadcast %cst_18 : f32 to vector<8x1xf32>
    %57 = arith.maximumf %50, %56 : vector<8x1xf32>
    %58 = arith.divf %55, %57 : vector<8x1xf32>
    %cst_19 = arith.constant 1.000000e+00 : f32
    %59 = vector.broadcast %cst_19 : f32 to vector<8x1xf32>
    %60 = arith.maximumf %2, %59 : vector<8x1xf32>
    %61 = arith.divf %52, %60 : vector<8x1xf32>
    %c127_i32 = arith.constant 127 : i32
    %62 = tpu.dynamic_rotate %6 by %c127_i32 dim 1 : vector<8x128xf32>, i32 -> vector<8x128xf32>
    %63 = arith.subf %62, %6 : vector<8x128xf32>
    %c1_i32_20 = arith.constant 1 : i32
    %64 = vector.broadcast %c1_i32_20 : i32 to vector<8x1xi32>
    %65 = arith.subi %0, %64 : vector<8x1xi32>
    %66 = vector.broadcast %7 : vector<1x128xi32> to vector<8x128xi32>
    %67 = vector.broadcast %65 : vector<8x1xi32> to vector<8x128xi32>
    %68 = arith.cmpi slt, %66, %67 : vector<8x128xi32>
    %cst_21 = arith.constant 0.000000e+00 : f32
    %69 = vector.broadcast %cst_21 : f32 to vector<8x128xf32>
    %70 = arith.subf %69, %63 : vector<8x128xf32>
    %cst_22 = arith.constant 0.000000e+00 : f32
    %71 = vector.broadcast %cst_22 : f32 to vector<8x128xf32>
    %72 = arith.maximumf %70, %71 : vector<8x128xf32>
    %cst_23 = arith.constant 0.000000e+00 : f32
    %73 = vector.broadcast %cst_23 : f32 to vector<8x128xf32>
    %74 = arith.select %68, %72, %73 : vector<8x128xi1>, vector<8x128xf32>
    %cst_24 = arith.constant dense<0.000000e+00> : vector<8xf32>
    %75 = vector.multi_reduction <add>, %74, %cst_24 [1] : vector<8x128xf32> to vector<8xf32>
    %76 = vector.shape_cast %75 : vector<8xf32> to vector<8x1xf32>
    %cst_25 = arith.constant 1.000000e+00 : f32
    %77 = vector.broadcast %cst_25 : f32 to vector<8x1xf32>
    %78 = arith.subf %2, %77 : vector<8x1xf32>
    %cst_26 = arith.constant 1.000000e+00 : f32
    %79 = vector.broadcast %cst_26 : f32 to vector<8x1xf32>
    %80 = arith.maximumf %78, %79 : vector<8x1xf32>
    %81 = arith.divf %76, %80 : vector<8x1xf32>
    %c127_i32_27 = arith.constant 127 : i32
    %82 = tpu.dynamic_rotate %63 by %c127_i32_27 dim 1 : vector<8x128xf32>, i32 -> vector<8x128xf32>
    %83 = arith.subf %82, %63 : vector<8x128xf32>
    %c2_i32 = arith.constant 2 : i32
    %84 = vector.broadcast %c2_i32 : i32 to vector<8x1xi32>
    %85 = arith.subi %0, %84 : vector<8x1xi32>
    %86 = vector.broadcast %7 : vector<1x128xi32> to vector<8x128xi32>
    %87 = vector.broadcast %85 : vector<8x1xi32> to vector<8x128xi32>
    %88 = arith.cmpi slt, %86, %87 : vector<8x128xi32>
    %89 = math.absf %83 : vector<8x128xf32>
    %cst_28 = arith.constant 0.000000e+00 : f32
    %90 = vector.broadcast %cst_28 : f32 to vector<8x128xf32>
    %91 = arith.select %88, %89, %90 : vector<8x128xi1>, vector<8x128xf32>
    %cst_29 = arith.constant dense<0.000000e+00> : vector<8xf32>
    %92 = vector.multi_reduction <add>, %91, %cst_29 [1] : vector<8x128xf32> to vector<8xf32>
    %93 = vector.shape_cast %92 : vector<8xf32> to vector<8x1xf32>
    %cst_30 = arith.constant 2.000000e+00 : f32
    %94 = vector.broadcast %cst_30 : f32 to vector<8x1xf32>
    %95 = arith.subf %2, %94 : vector<8x1xf32>
    %cst_31 = arith.constant 1.000000e+00 : f32
    %96 = vector.broadcast %cst_31 : f32 to vector<8x1xf32>
    %97 = arith.maximumf %95, %96 : vector<8x1xf32>
    %98 = arith.divf %93, %97 : vector<8x1xf32>
    %c1_i32_32 = arith.constant 1 : i32
    %99 = vector.broadcast %c1_i32_32 : i32 to vector<8x1xi32>
    %100 = arith.cmpi eq, %1, %99 : vector<8x1xi32>
    %101 = arith.select %100, %58, %61 : vector<8x1xi1>, vector<8x1xf32>
    %102 = arith.select %100, %81, %98 : vector<8x1xi1>, vector<8x1xf32>
    %cst_33 = arith.constant 0.00999999977 : f32
    %103 = vector.broadcast %cst_33 : f32 to vector<8x1xf32>
    %104 = arith.mulf %103, %102 : vector<8x1xf32>
    %105 = arith.addf %101, %104 : vector<8x1xf32>
    %106 = tpu.iota {dimensions = array<i32: 1>} : vector<8x128xi32>
    %c0_i32_34 = arith.constant 0 : i32
    %107 = vector.broadcast %c0_i32_34 : i32 to vector<8x128xi32>
    %108 = arith.cmpi eq, %106, %107 : vector<8x128xi32>
    %c1_i32_35 = arith.constant 1 : i32
    %109 = vector.broadcast %c1_i32_35 : i32 to vector<8x128xi32>
    %110 = arith.cmpi eq, %106, %109 : vector<8x128xi32>
    %c2_i32_36 = arith.constant 2 : i32
    %111 = vector.broadcast %c2_i32_36 : i32 to vector<8x128xi32>
    %112 = arith.cmpi eq, %106, %111 : vector<8x128xi32>
    %cst_37 = arith.constant 0.000000e+00 : f32
    %113 = vector.shape_cast %105 : vector<8x1xf32> to vector<8x1xf32>
    %114 = vector.broadcast %113 : vector<8x1xf32> to vector<8x128xf32>
    %115 = vector.broadcast %cst_37 : f32 to vector<8x128xf32>
    %116 = arith.select %112, %114, %115 : vector<8x128xi1>, vector<8x128xf32>
    %117 = vector.shape_cast %102 : vector<8x1xf32> to vector<8x1xf32>
    %118 = vector.broadcast %117 : vector<8x1xf32> to vector<8x128xf32>
    %119 = arith.select %110, %118, %116 : vector<8x128xi1>, vector<8x128xf32>
    %120 = vector.shape_cast %101 : vector<8x1xf32> to vector<8x1xf32>
    %121 = vector.broadcast %120 : vector<8x1xf32> to vector<8x128xf32>
    %122 = arith.select %108, %121, %119 : vector<8x128xi1>, vector<8x128xf32>
    %c0_38 = arith.constant 0 : index
    %c0_39 = arith.constant 0 : index
    %123 = vector.load %arg4[%c0_38, %c0_39] : memref<8x128xf32, #tpu.memory_space<vmem>>, vector<8x128xf32>
    tpu.vector_store %arg4[%c0_38, %c0_39], %122 {strides = array<i32>} : memref<8x128xf32, #tpu.memory_space<vmem>>, vector<8x128xf32>,
    return
  }
  func.func @transform_0(%arg0: i32) -> (i32, i32) {
    %c0_i32 = arith.constant 0 : i32
    %c0_i32_0 = arith.constant 0 : i32
    return %arg0, %c0_i32 : i32, i32
  }
  func.func @transform_1(%arg0: i32) -> (i32, i32) {
    %c0_i32 = arith.constant 0 : i32
    %c0_i32_0 = arith.constant 0 : i32
    return %arg0, %c0_i32 : i32, i32
  }
  func.func @transform_2(%arg0: i32) -> (i32, i32, i32) {
    %c0_i32 = arith.constant 0 : i32
    %c0_i32_0 = arith.constant 0 : i32
    %c0_i32_1 = arith.constant 0 : i32
    return %c0_i32, %arg0, %c0_i32_0 : i32, i32, i32
  }
  func.func @transform_3(%arg0: i32) -> (i32, i32) {
    %c0_i32 = arith.constant 0 : i32
    %c0_i32_0 = arith.constant 0 : i32
    return %arg0, %c0_i32 : i32, i32
  }
}

</mosaic_0001>

<llo_original>
// kernel: _taa_temporal_batched_impl.1
$region0: #{_taa_temporal_batched_impl.1}
  #allocation0 [shape = 'u32[]', space=smem, size = 0x4, offset = 0x4, fixed_abs, tag = 'smem constant byte address 0x4 - core index']
  #allocation1 [shape = 'u32[144,128]{1,0:T(1,128)}', space=vmem, size = 0x12000, scoped, tag = 'internal scratch']
  %s0 = inlined_call_operand.vmem [shape: s32[8,1], index: 0, kind: input, shape index: {}]
  %s1 = inlined_call_operand.vmem [shape: s32[8,1], index: 1, kind: input, shape index: {}]
  %s2 = inlined_call_operand.vmem [shape: f32[2,8,128], index: 2, kind: input, shape index: {}]
  %s3 = inlined_call_operand.vmem [shape: f32[8,128], index: 3, kind: output, shape index: {}]
  %s4 = sld [smem:[#allocation0]]
  $region22: #{_taa_temporal_batched_impl.1} parent=0
    _
  %s6 = ssub.s32 1, %s4
  %s7 = scalar_select 0, %s6, %s4
  // Predicated region
  $region2: #{_taa_temporal_batched_impl.1} parent=0 // pred_check
    _
  $region3: #{_taa_temporal_batched_impl.1} parent=0 // pred_check_branch
    %9 = sbr.rel (0) target = $region5
  $region4: #{_taa_temporal_batched_impl.1} parent=0 // pred_region
    _
  $region5: #{_taa_temporal_batched_impl.1} parent=0 // pred_fallthru
    _
  // Predicated region
  $region6: #{_taa_temporal_batched_impl.1} parent=0 // pred_check
    _
  $region7: #{_taa_temporal_batched_impl.1} parent=0 // pred_check_branch
    %11 = sbr.rel (0) target = $region9
  $region8: #{_taa_temporal_batched_impl.1} parent=0 // pred_region
    _
  $region9: #{_taa_temporal_batched_impl.1} parent=0 // pred_fallthru
    _
  // Predicated region
  $region10: #{_taa_temporal_batched_impl.1} parent=0 // pred_check
    _
  $region11: #{_taa_temporal_batched_impl.1} parent=0 // pred_check_branch
    %13 = sbr.rel (0) target = $region13
  $region12: #{_taa_temporal_batched_impl.1} parent=0 // pred_region
    _
  $region13: #{_taa_temporal_batched_impl.1} parent=0 // pred_fallthru
    _
  %v14 = vld [vmem:[%s0] sm:$0xff]
  %v15 = vld [vmem:[%s1] sm:$0xff]
  %v16 = vcvt.s32.f32 %v14
  %v17 = vld [vmem:[%s2] sm:$0xff]
  %s18 = scalar_lea.vmem %s2, 8
  %v19 = vld [vmem:[%s18] sm:$0xff]
  %v20 = vlaneseq
  %v21 = vand.u32 %v20, 127
  %22 = vset.pattern.permute.xlu0 0
  %23 = vperm.xlu0 %22, %v14
  %v24 = vpop.permute.xlu0 %23
  %vm25 = vcmp.lt.s32.totalorder %v21, %v24
  %v26 = vmax.f32 %v17, %v19
  %v27 = vsub.f32 %v17, %v26
  %v28 = vmul.f32 %v27, 1.442695
  %v29 = vpow.pop %v28
  %v30 = vsub.f32 %v19, %v26
  %v31 = vmul.f32 %v30, 1.442695
  %v32 = vpow.pop %v31
  %v33 = vadd.f32 %v29, %v32
  %v34 = vlog2.pop %v33
  %v35 = vmul.f32 %v34, 0.6931472
  %v36 = vadd.f32 %v35, %v26
  %vm37 = vcmp.eq.s32.totalorder %v15, 0
  %v38 = vsel %vm37, 1, 0
  %39 = vset.pattern.permute.xlu0 0
  %40 = vperm.xlu0 %39, %v38
  %v41 = vpop.permute.xlu0 %40
  %vm42 = vcmp.eq.s32.totalorder %v41, 1
  %v43 = vsel %vm42, %v17, 0.0
  %vm44 = vcmp.eq.s32.totalorder %v15, 1
  %v45 = vsel %vm44, 1, 0
  %46 = vset.pattern.permute.xlu0 0
  %47 = vperm.xlu0 %46, %v45
  %v48 = vpop.permute.xlu0 %47
  %vm49 = vcmp.eq.s32.totalorder %v48, 1
  %v50 = vsel %vm49, %v19, %v43
  %v51 = vsub.f32 %v36, %v50
  %v52 = vsel %vm25, %v51, 0.0
  %v53 = vcvt.s32.f32 %v21
  %v54 = vsub.f32 90.0, %v53
  %v55 = vsub.f32 %v54, 1.0
  %v56 = vmul.f32 %v55, 0.1
  %v57 = vmax.f32 %v56, 0.0
  %v58 = vsub.f32 0.0, %v57
  %v59 = vmul.f32 %v58, 1.442695
  %v60 = vpow.pop %v59
  %v61 = vsel %vm25, %v60, 0.0
  %62 = vadd.xlane.f32.xlu0 %v61
  %v63 = vpop.xlane.xlu0 %62
  %64 = vadd.xlane.f32.xlu0 %v52
  %v65 = vpop.xlane.xlu0 %64
  %v66 = vmul.f32 %v61, %v52
  %67 = vadd.xlane.f32.xlu0 %v66
  %v68 = vpop.xlane.xlu0 %67
  %v69 = vmax.f32 %v63, 1e-30
  %v70 = vrcp.pop %v69
  %v71 = vmul.f32 %v68, %v70
  %v72 = vmax.f32 %v16, 1.0
  %v73 = vrcp.pop %v72
  %v74 = vmul.f32 %v65, %v73
  %75 = vrot.lane.b32.xlu0 %v19, 127
  %v76 = vpop.permute.xlu0 %75
  %v77 = vsub.f32 %v76, %v19
  %v78 = vsub.s32 %v14, 1
  %79 = vset.pattern.permute.xlu0 0
  %80 = vperm.xlu0 %79, %v78
  %v81 = vpop.permute.xlu0 %80
  %vm82 = vcmp.lt.s32.totalorder %v21, %v81
  %v83 = vsub.f32 0.0, %v77
  %v84 = vmax.f32 %v83, 0.0
  %v85 = vsel %vm82, %v84, 0.0
  %86 = vadd.xlane.f32.xlu0 %v85
  %v87 = vpop.xlane.xlu0 %86
  %v88 = vsub.f32 %v16, 1.0
  %v89 = vmax.f32 %v88, 1.0
  %v90 = vrcp.pop %v89
  %v91 = vmul.f32 %v87, %v90
  %92 = vrot.lane.b32.xlu0 %v77, 127
  %v93 = vpop.permute.xlu0 %92
  %v94 = vsub.f32 %v93, %v77
  %v95 = vsub.s32 %v14, 2
  %96 = vset.pattern.permute.xlu0 0
  %97 = vperm.xlu0 %96, %v95
  %v98 = vpop.permute.xlu0 %97
  %vm99 = vcmp.lt.s32.totalorder %v21, %v98
  %v100 = vand.u32 2147483647, %v94
  %v101 = vsel %vm99, %v100, 0.0
  %102 = vadd.xlane.f32.xlu0 %v101
  %v103 = vpop.xlane.xlu0 %102
  %v104 = vsub.f32 %v16, 2.0
  %v105 = vmax.f32 %v104, 1.0
  %v106 = vrcp.pop %v105
  %v107 = vmul.f32 %v103, %v106
  %v108 = vsel %vm44, %v71, %v74
  %v109 = vsel %vm44, %v91, %v107
  %v110 = vmul.f32 %v109, 0.01
  %v111 = vadd.f32 %v108, %v110
  %vm112 = vcmp.eq.s32.totalorder %v21, 0
  %vm113 = vcmp.eq.s32.totalorder %v21, 1
  %vm114 = vcmp.eq.s32.totalorder %v21, 2
  %116 = vset.pattern.permute.xlu0 0
  %117 = vperm.xlu0 %116, %v111
  %v118 = vpop.permute.xlu0 %117
  %v120 = vsel %vm114, %v118, 0.0
  %122 = vset.pattern.permute.xlu0 0
  %123 = vperm.xlu0 %122, %v109
  %v124 = vpop.permute.xlu0 %123
  %v126 = vsel %vm113, %v124, %v120
  %128 = vset.pattern.permute.xlu0 0
  %129 = vperm.xlu0 %128, %v108
  %v130 = vpop.permute.xlu0 %129
  %v132 = vsel %vm112, %v130, %v126
  %133 = vst [vmem:[%s3] sm:$0xff] %v132
  // Predicated region
  $region14: #{_taa_temporal_batched_impl.1} parent=0 // pred_check
    _
  $region15: #{_taa_temporal_batched_impl.1} parent=0 // pred_check_branch
    %135 = sbr.rel (0) target = $region17
  $region16: #{_taa_temporal_batched_impl.1} parent=0 // pred_region
    _
  $region17: #{_taa_temporal_batched_impl.1} parent=0 // pred_fallthru
    _
  // Predicated region
  $region18: #{_taa_temporal_batched_impl.1} parent=0 // pred_check
    _
  $region19: #{_taa_temporal_batched_impl.1} parent=0 // pred_check_branch
    %137 = sbr.rel (0) target = $region21
  $region20: #{_taa_temporal_batched_impl.1} parent=0 // pred_region
    _
  $region21: #{_taa_temporal_batched_impl.1} parent=0 // pred_fallthru
    _

</llo_original>
